<compile_context>
chip_gen: v5e
topology: v5e:2x2
jax: 0.10.0
libtpu: 0.0.40
codegen_flags: <defaults>
</compile_context>

<pallas_src>
import functools
import math

import jax
import jax.numpy as jnp
from jax.experimental import pallas as pl
from jax.experimental.pallas import tpu as pltpu

_TILE_TARGET_BYTES = 4 * 1024 * 1024   # per x / out tile
_VMEM_LIMIT_BYTES = 48 * 1024 * 1024   # actual use ~17 MiB; below v7x 64 MiB physical


def make_pe_table(d_model: int, max_len: int = 5000, dtype=jnp.float32) -> jnp.ndarray:
    """Sin/cos positional-encoding buffer, shape (max_len, 1, d_model) (matches PyTorch)."""
    position = jnp.arange(max_len, dtype=jnp.float32)[:, None]                 # (max_len, 1)
    div_term = jnp.exp(
        jnp.arange(0, d_model, 2, dtype=jnp.float32) * (-math.log(10000.0) / d_model)
    )
    angles = position * div_term                                               # (max_len, ceil(d/2))
    pe = jnp.zeros((max_len, d_model), dtype=jnp.float32)
    pe = pe.at[:, 0::2].set(jnp.sin(angles))
    pe = pe.at[:, 1::2].set(jnp.cos(angles)[:, : d_model // 2])
    return pe[:, None, :].astype(dtype)                                        # (max_len, 1, d_model)


# ---------------------------------------------------------------------------
# Kernels
# ---------------------------------------------------------------------------

def _pe_add_lane_folded_kernel(x_ref, pe_ref, o_ref, *, batch: int):
    # x_ref / o_ref: (S_TILE, B*D) lane-dense tiles; pe_ref: (S_TILE, D).
    pe = pe_ref[...]
    if batch > 1:
        # Replicate the D-lane encoding row across the B batch blocks folded into the
        # lane axis. Lane-dim concat is XLU work, fully hidden under the HBM-bound DMA.
        pe = jnp.concatenate([pe] * batch, axis=-1)                            # (S_TILE, B*D)
    o_ref[...] = (x_ref[...] + pe).astype(o_ref.dtype)


def _pe_add_broadcast_kernel(x_ref, pe_ref, o_ref):
    # x_ref / o_ref: (S_TILE, B_TILE, D); pe_ref: (S_TILE, 1, D). Sublane broadcast add.
    o_ref[...] = (x_ref[...] + pe_ref[...]).astype(o_ref.dtype)


# ---------------------------------------------------------------------------
# Tile selection
# ---------------------------------------------------------------------------

def _tile_rows(seq_len: int, row_bytes: int, target_bytes: int) -> int:
    """Sublane-aligned (x8) S tile so each x/out tile is ~target_bytes."""
    rows = max(1, target_bytes // max(1, row_bytes))
    if rows >= seq_len:
        return seq_len                         # full extent is always a legal block dim
    return max(8, (rows // 8) * 8)


def _choose_3d_tiles(seq_len: int, batch: int, d_model: int, itemsize: int, target_bytes: int):
    """(b_tile, s_tile) for the batch-tiled fallback path."""
    slab = max(1, d_model * itemsize)          # one (1, D) row
    b_rows = max(1, target_bytes // slab)
    if b_rows >= batch:
        b_tile = batch                         # full extent -> legal
    else:
        b_tile = min(batch, max(8, (b_rows // 8) * 8))
    s_tile = min(seq_len, max(1, target_bytes // (b_tile * slab)))
    return b_tile, s_tile


# ---------------------------------------------------------------------------
# Forward
# ---------------------------------------------------------------------------

@functools.partial(jax.jit, donate_argnums=(0,), static_argnums=(2,))
def _forward_jit(x: jnp.ndarray, pe: jnp.ndarray, tile_target_bytes: int) -> jnp.ndarray:
    S, B, D = x.shape
    max_len = pe.shape[0]
    if S > max_len:
        raise ValueError(f"sequence length {S} exceeds positional-encoding table length {max_len}")

    if pe.dtype != x.dtype:
        pe = pe.astype(x.dtype)                # keep pe HBM traffic at activation width
    itemsize = x.dtype.itemsize

    compiler_params_1d = pltpu.CompilerParams(
        dimension_semantics=("parallel",),     # shards S-tiles across v7x's 2 TCs
        vmem_limit_bytes=_VMEM_LIMIT_BYTES,
    )
    compiler_params_2d = pltpu.CompilerParams(
        dimension_semantics=("parallel", "parallel"),
        vmem_limit_bytes=_VMEM_LIMIT_BYTES,
    )

    if min(8, S) * B * D * itemsize <= tile_target_bytes:
        # ---- Path A: lane-folded (common case) -------------------------------------
        x2d = x.reshape(S, B * D)              # free view: fold batch into lanes
        pe2d = pe.reshape(max_len, D)
        s_tile = _tile_rows(S, B * D * itemsize, tile_target_bytes)
        grid = (pl.cdiv(S, s_tile),)

        out2d = pl.pallas_call(
            functools.partial(_pe_add_lane_folded_kernel, batch=B),
            out_shape=jax.ShapeDtypeStruct((S, B * D), x.dtype),
            grid_spec=pltpu.PrefetchScalarGridSpec(
                num_scalar_prefetch=0,
                grid=grid,
                in_specs=[
                    pl.BlockSpec((s_tile, B * D), lambda i: (i, 0)),   # x tile
                    pl.BlockSpec((s_tile, D), lambda i: (i, 0)),       # pe rows: only [0, ~S)
                ],
                out_specs=pl.BlockSpec((s_tile, B * D), lambda i: (i, 0)),
            ),
            compiler_params=compiler_params_1d,
            input_output_aliases={0: 0},       # write the result back into x's buffer
        )(x2d, pe2d)
        return out2d.reshape(S, B, D)

    # ---- Path B: batch-tiled 3-D blocks (very wide B*D rows) -----------------------
    b_tile, s_tile = _choose_3d_tiles(S, B, D, itemsize, tile_target_bytes)
    grid = (pl.cdiv(S, s_tile), pl.cdiv(B, b_tile))

    out = pl.pallas_call(
        _pe_add_broadcast_kernel,
        out_shape=jax.ShapeDtypeStruct((S, B, D), x.dtype),
        grid_spec=pltpu.PrefetchScalarGridSpec(
            num_scalar_prefetch=0,
            grid=grid,
            in_specs=[
                pl.BlockSpec((s_tile, b_tile, D), lambda i, j: (i, j, 0)),   # x tile
                pl.BlockSpec((s_tile, 1, D), lambda i, j: (i, 0, 0)),        # pe rows
            ],
            out_specs=pl.BlockSpec((s_tile, b_tile, D), lambda i, j: (i, j, 0)),
        ),
        compiler_params=compiler_params_2d,
        input_output_aliases={0: 0},
        )(x, pe)
    return out


def positional_encoding_forward(x: jnp.ndarray, pe: jnp.ndarray,
                                tile_target_bytes: int = _TILE_TARGET_BYTES) -> jnp.ndarray:
    """x: (S, B, D); pe: (max_len, 1, D). Returns x + pe[:S] (in place on x's buffer)."""
    return _forward_jit(x, pe, int(tile_target_bytes))


if __name__ == "__main__":
    d_model = 32
    max_len = 5000
    seq_len = 8
    batch = 4

    key = jax.random.PRNGKey(0)
    x = jax.random.normal(key, (seq_len, batch, d_model), dtype=jnp.float32)
    pe = make_pe_table(d_model, max_len, dtype=x.dtype)

    # Reference computed BEFORE the kernel calls; each call donates its own input copy.
    ref = x + pe[:seq_len]
    x_a = x + 0.0
    x_b = x + 0.0

    # Default lane-folded path.
    out_a = jax.block_until_ready(positional_encoding_forward(x_a, pe))
    assert out_a.shape == (seq_len, batch, d_model)
    assert jnp.allclose(out_a, ref, atol=1e-6), "mismatch vs reference (lane-folded path)"

    # Force the batch-tiled fallback path (tiny tile budget) to exercise it too.
    out_b = jax.block_until_ready(positional_encoding_forward(x_b, pe, tile_target_bytes=2048))
    assert out_b.shape == (seq_len, batch, d_model)
    assert jnp.allclose(out_b, ref, atol=1e-6), "mismatch vs reference (batch-tiled path)"

    print("KERNEL_OK")
</pallas_src>

<mosaic_0001>
module attributes {stable_mosaic.version = 11 : i64} {
  func.func @_pe_add_lane_folded_kernel(%arg0: i32, %arg1: memref<8x128xf32, #tpu.memory_space<vmem>>, %arg2: memref<8x32xf32, #tpu.memory_space<vmem>>, %arg3: memref<8x128xf32, #tpu.memory_space<vmem>>) attributes {dimension_semantics = [#tpu.dimension_semantics<parallel>], iteration_bounds = array<i64: 1>, scalar_prefetch = 0 : i64, scratch_operands = 0 : i64, tpu.core_type = #tpu.core_type<tc>, window_params = [{transform_indices = @transform_0, window_bounds = array<i64: 8, 128>}, {transform_indices = @transform_1, window_bounds = array<i64: 8, 32>}, {transform_indices = @transform_2, window_bounds = array<i64: 8, 128>}]} {
    %c0 = arith.constant 0 : index
    %c0_0 = arith.constant 0 : index
    %0 = vector.load %arg2[%c0, %c0_0] : memref<8x32xf32, #tpu.memory_space<vmem>>, vector<8x32xf32>
    %1 = tpu.concatenate %0, %0, %0, %0 in 1 : vector<8x32xf32>, vector<8x32xf32>, vector<8x32xf32>, vector<8x32xf32> -> vector<8x128xf32>
    %c0_1 = arith.constant 0 : index
    %c0_2 = arith.constant 0 : index
    %2 = vector.load %arg1[%c0_1, %c0_2] : memref<8x128xf32, #tpu.memory_space<vmem>>, vector<8x128xf32>
    %3 = arith.addf %2, %1 : vector<8x128xf32>
    %c0_3 = arith.constant 0 : index
    %c0_4 = arith.constant 0 : index
    %4 = vector.load %arg3[%c0_3, %c0_4] : memref<8x128xf32, #tpu.memory_space<vmem>>, vector<8x128xf32>
    tpu.vector_store %arg3[%c0_3, %c0_4], %3 {strides = array<i32>} : memref<8x128xf32, #tpu.memory_space<vmem>>, vector<8x128xf32>,
    return
  }
  func.func @transform_0(%arg0: i32) -> (i32, i32) {
    %c0_i32 = arith.constant 0 : i32
    %c0_i32_0 = arith.constant 0 : i32
    return %arg0, %c0_i32 : i32, i32
  }
  func.func @transform_1(%arg0: i32) -> (i32, i32) {
    %c0_i32 = arith.constant 0 : i32
    %c0_i32_0 = arith.constant 0 : i32
    return %arg0, %c0_i32 : i32, i32
  }
  func.func @transform_2(%arg0: i32) -> (i32, i32) {
    %c0_i32 = arith.constant 0 : i32
    %c0_i32_0 = arith.constant 0 : i32
    return %arg0, %c0_i32 : i32, i32
  }
}

</mosaic_0001>

<llo_original>
// kernel: _forward_jit.1
$region0: #{_forward_jit.1}
  #allocation0 [shape = 'u32[]', space=smem, size = 0x4, offset = 0x4, fixed_abs, tag = 'smem constant byte address 0x4 - core index']
  #allocation1 [shape = 'u32[72,128]{1,0:T(1,128)}', space=vmem, size = 0x9000, scoped, tag = 'internal scratch']
  %s0 = inlined_call_operand.vmem [shape: f32[8,128], index: 0, kind: input, shape index: {}, may-alias: {0,2}]
  %s1 = inlined_call_operand.vmem [shape: f32[5000,32], index: 1, kind: input, shape index: {}]
  %s2 = inlined_call_operand.vmem [shape: f32[8,128], index: 2, kind: output, shape index: {}, may-alias: {0,2}]
  %s3 = sld [smem:[#allocation0]]
  $region18: #{_forward_jit.1} parent=0
    _
  %s5 = ssub.s32 1, %s3
  %s6 = scalar_select 0, %s5, %s3
  // Predicated region
  $region2: #{_forward_jit.1} parent=0 // pred_check
    _
  $region3: #{_forward_jit.1} parent=0 // pred_check_branch
    %8 = sbr.rel (0) target = $region5
  $region4: #{_forward_jit.1} parent=0 // pred_region
    _
  $region5: #{_forward_jit.1} parent=0 // pred_fallthru
    _
  // Predicated region
  $region6: #{_forward_jit.1} parent=0 // pred_check
    _
  $region7: #{_forward_jit.1} parent=0 // pred_check_branch
    %10 = sbr.rel (0) target = $region9
  $region8: #{_forward_jit.1} parent=0 // pred_region
    _
  $region9: #{_forward_jit.1} parent=0 // pred_fallthru
    _
  %v11 = vld [vmem:[%s1] sm:$0xff]
  %13 = vrot.lane.b32.xlu0 %v11, 32
  %v14 = vpop.permute.xlu0 %13
  %16 = vrot.lane.b32.xlu0 %v11, 64
  %v17 = vpop.permute.xlu0 %16
  %19 = vrot.lane.b32.xlu0 %v11, 96
  %v20 = vpop.permute.xlu0 %19
  %vm22 = vcmask 261120
  %v23 = vsel %vm22, %v11, %v14
  %vm24 = vcmask 523264
  %v25 = vsel %vm24, %v23, %v17
  %vm26 = vcmask 785408
  %v27 = vsel %vm26, %v25, %v20
  %v28 = vld [vmem:[%s0] sm:$0xff]
  %v29 = vadd.f32 %v28, %v27
  %30 = vst [vmem:[%s2] sm:$0xff] %v29
  // Predicated region
  $region10: #{_forward_jit.1} parent=0 // pred_check
    _
  $region11: #{_forward_jit.1} parent=0 // pred_check_branch
    %32 = sbr.rel (0) target = $region13
  $region12: #{_forward_jit.1} parent=0 // pred_region
    _
  $region13: #{_forward_jit.1} parent=0 // pred_fallthru
    _
  // Predicated region
  $region14: #{_forward_jit.1} parent=0 // pred_check
    _
  $region15: #{_forward_jit.1} parent=0 // pred_check_branch
    %34 = sbr.rel (0) target = $region17
  $region16: #{_forward_jit.1} parent=0 // pred_region
    _
  $region17: #{_forward_jit.1} parent=0 // pred_fallthru
    _

</llo_original>
